<compile_context>
chip_gen: v6e
topology: v6e:2x2x1
jax: 0.10.0
libtpu: 0.0.40
codegen_flags: <defaults>
</compile_context>

<pallas_src>
import jax
import jax.numpy as jnp
from jax.experimental import pallas as pl
from jax.experimental.pallas import tpu as pltpu


def _round_up(x, a):
    return (x + a - 1) // a * a


def _padded_c_in(c_in, k):
    """Pad the per-neighbor channel count so the packed bf16 slab (K*C_in_pad, M)
    has a row count that is a multiple of the bf16 16-sublane tile."""
    c_pad = _round_up(c_in, 8)
    if (k * c_pad) % 16 != 0:
        c_pad = _round_up(c_in, 16)
    return c_pad


def _choose_tile(m, tm_target, tm_cap):
    """128-aligned point-column tile + padded M.  Prefers >= 2 and an even
    number of grid steps (v7x: 2 TensorCores share the 'parallel' axis)."""
    m128 = _round_up(m, 128)
    tm = max(128, (min(tm_target, tm_cap, m128) // 128) * 128)
    steps = -(-m128 // tm)
    if m128 >= 256:
        steps = max(steps, 2)
        if steps % 2:
            steps += 1
        tm = max(128, _round_up(-(-m128 // steps), 128))
    m_pad = _round_up(m, tm)
    return tm, m_pad


def _invres_mlp_kernel(fj_ref, id_ref, wbd_ref, b1_ref, w2_ref, b2_ref,
                       w3_ref, b3_ref, o_ref):
    """Fused InvResMLP body for one tile of TM points (points on lanes).

    fj_ref : (K*C_in_pad, TM) bf16  packed 'dp_fj' slab (neighbor-major rows)
    id_ref : (C, TM)          f32   residual input
    wbd_ref: (K*C, K*C_in_pad) bf16 block-diag LocalAggregation conv (BN folded)
    b1_ref : (C, 1) f32             LocalAggregation bias (BN folded)
    w2_ref : (Cmid, C) bf16 ; b2_ref: (Cmid, 1) f32   pwconv[0] (BN folded)
    w3_ref : (C, Cmid) bf16 ; b3_ref: (C, 1) f32      pwconv[1] (BN folded)
    o_ref  : (C, TM)          f32   output
    """
    c = b1_ref.shape[0]
    k = wbd_ref.shape[0] // c

    # LocalAggregation: all K neighbor 1x1 convs as ONE block-diagonal MXU matmul.
    h_all = jnp.dot(wbd_ref[...], fj_ref[...],
                    preferred_element_type=jnp.float32)          # (K*C, TM)

    # Max over neighbors via a halving tree of static row slices.
    # Bias-add and ReLU commute with max, so they are applied once afterwards.
    groups = k
    while groups > 1:
        half = groups // 2
        top = h_all[: half * c, :]
        bot = h_all[half * c: 2 * half * c, :]
        red = jnp.maximum(top, bot)
        if groups % 2:
            red = jnp.concatenate([red, h_all[2 * half * c:, :]], axis=0)
            groups = half + 1
        else:
            groups = half
        h_all = red
    h = jnp.maximum(h_all + b1_ref[...], 0.0)                    # (C, TM)

    # pwconv[0]: conv1d + BN + ReLU  (bf16 MXU operands, f32 accumulate)
    h = jnp.maximum(
        jnp.dot(w2_ref[...], h.astype(jnp.bfloat16),
                preferred_element_type=jnp.float32) + b2_ref[...], 0.0)
    # pwconv[1]: conv1d + BN (no activation)
    h = jnp.dot(w3_ref[...], h.astype(jnp.bfloat16),
                preferred_element_type=jnp.float32) + b3_ref[...]

    # residual add + final ReLU (all f32 elementwise)
    o_ref[...] = jnp.maximum(h + id_ref[...], 0.0)


def invres_mlp_pallas(fj, identity, wbd, b1, w2, b2, w3, b3, *,
                      tm_target=2048, vmem_budget_bytes=24 << 20):
    """fj: (K*C_in_pad, M) bf16, identity: (C, M) f32.  Returns (C, M) f32."""
    kc_in, m = fj.shape
    c = identity.shape[0]
    kc = wbd.shape[0]
    c_mid = w2.shape[0]

    # Exact double-buffered per-point-column VMEM bytes (bf16 tiles 16 sublanes).
    bytes_per_col = (2 * _round_up(kc_in, 16) * fj.dtype.itemsize   # fj bf16
                     + 2 * _round_up(c, 8) * 4                      # identity f32
                     + 2 * _round_up(c, 8) * 4)                     # output f32
    tm_cap = max(128, (vmem_budget_bytes // bytes_per_col) // 128 * 128)

    tm, m_pad = _choose_tile(m, tm_target, tm_cap)
    if m_pad != m:
        fj = jnp.pad(fj, ((0, 0), (0, m_pad - m)))
        identity = jnp.pad(identity, ((0, 0), (0, m_pad - m)))

    grid = (m_pad // tm,)
    full = lambda a: pl.BlockSpec(a.shape, lambda i: (0, 0))

    flops = 2 * m_pad * (kc * kc_in + c_mid * c + c * c_mid)
    bytes_accessed = (fj.size * fj.dtype.itemsize
                      + identity.size * 4 + c * m_pad * 4
                      + wbd.size * wbd.dtype.itemsize
                      + (w2.size + w3.size) * w2.dtype.itemsize
                      + (b1.size + b2.size + b3.size) * 4)

    out = pl.pallas_call(
        _invres_mlp_kernel,
        out_shape=jax.ShapeDtypeStruct((c, m_pad), jnp.float32),
        grid=grid,
        in_specs=[
            # NOTE(v7x): add pipeline_mode=pl.Buffered(3) here if DMA is exposed.
            pl.BlockSpec((kc_in, tm), lambda i: (0, i)),
            pl.BlockSpec((c, tm), lambda i: (0, i)),
            full(wbd), full(b1), full(w2), full(b2), full(w3), full(b3),
        ],
        out_specs=pl.BlockSpec((c, tm), lambda i: (0, i)),
        compiler_params=pltpu.CompilerParams(
            dimension_semantics=("parallel",),
            vmem_limit_bytes=32 * 1024 * 1024),
        cost_estimate=pl.CostEstimate(
            flops=flops, transcendentals=0, bytes_accessed=bytes_accessed),
    )(fj, identity, wbd, b1, w2, b2, w3, b3)
    return out[:, :m]


# ---------------- plain-JAX glue: ball-query grouping + layout plumbing -------


def ball_query_group(p, f, radius, nsample):
    """PointNet++-style ball query.

    p: (B, N, 3), f: (B, C, N)
    returns dp: (B, N, K, 3) relative neighbor coords, fj: (B, N, K, C).
    Neighbors strictly within `radius` taken in index order; rows with fewer
    than K valid neighbors are padded with the first valid neighbor.
    """
    b, n, _ = p.shape
    diff = p[:, :, None, :] - p[:, None, :, :]              # (B, N, N, 3)
    dist2 = jnp.sum(diff * diff, axis=-1)                   # (B, N, N)
    within = dist2 < radius ** 2                            # self always included
    key = jnp.where(within, jnp.arange(n, dtype=jnp.int32)[None, None, :], n)
    idx_sorted = jnp.argsort(key, axis=-1)[..., :nsample]   # (B, N, K)
    valid = jnp.take_along_axis(key, idx_sorted, axis=-1) < n
    idx = jnp.where(valid, idx_sorted, idx_sorted[..., :1])

    bi = jnp.arange(b)[:, None, None]
    grouped_xyz = p[bi, idx]                                 # (B, N, K, 3)
    dp = grouped_xyz - p[:, :, None, :]                      # relative positions
    f_t = jnp.transpose(f, (0, 2, 1))                        # (B, N, C)
    fj = f_t[bi, idx]                                        # (B, N, K, C)
    return dp, fj


def fold_conv_bn(w, gamma, beta, mean, var, eps=1e-5):
    """Fold eval-mode BatchNorm after a bias-free 1x1 conv into (weight, bias)."""
    scale = gamma / jnp.sqrt(var + eps)
    w_f = w * scale[:, None]
    b_f = (beta - mean * scale)[:, None]                     # (C_out, 1)
    return w_f, b_f


def build_block_diag_weight(w1, k, c_in_pad):
    """(C, C_in) -> block-diagonal (K*C, K*C_in_pad) with zero-padded channel cols."""
    c, c_in = w1.shape
    w1p = jnp.pad(w1, ((0, 0), (0, c_in_pad - c_in)))
    return jnp.kron(jnp.eye(k, dtype=w1.dtype), w1p)


def invres_mlp_forward(p, f, params, *, radius, nsample):
    """InvResMLP forward.  p: (B,N,3), f: (B,C,N) -> (p, f_out) with f_out (B,C,N)."""
    b, n, _ = p.shape
    c = f.shape[1]
    c_in = 3 + c
    c_in_pad = params["wbd"].shape[1] // nsample

    dp, fj = ball_query_group(p, f, radius, nsample)          # grouper
    feat = jnp.concatenate([dp, fj], axis=-1)                 # 'dp_fj': (B,N,K,3+C)
    if c_in_pad > c_in:
        feat = jnp.pad(feat, ((0, 0), (0, 0), (0, 0), (0, c_in_pad - c_in)))
    # Dense packed slab: neighbors*channels on sublanes (multiple of the bf16
    # 16-sublane tile), points on the 128-lane axis.
    feat = jnp.transpose(feat, (2, 3, 0, 1)).reshape(nsample * c_in_pad, b * n)
    feat = feat.astype(jnp.bfloat16)                          # halve dominant HBM read

    ident = jnp.transpose(f, (1, 0, 2)).reshape(c, b * n)     # (C, B*N) f32
    # (identity/output stay f32: at C=4 a bf16 block still pads to 16 sublanes,
    #  so bf16 would not reduce the transferred bytes.)

    out = invres_mlp_pallas(
        feat, ident, params["wbd"], params["b1"],
        params["w2"], params["b2"], params["w3"], params["b3"])
    f_out = jnp.transpose(out.reshape(c, b, n), (1, 0, 2))    # (B, C, N)
    return p, f_out


def invres_mlp_reference(p, f, w1, g1, be1, m1, v1, w2, g2, be2, m2, v2,
                         w3, g3, be3, m3, v3, *, radius, nsample, eps=1e-5):
    """Pure-JAX f32 reference of the PyTorch module (eval-mode BN)."""
    dp, fj = ball_query_group(p, f, radius, nsample)
    feat = jnp.concatenate([dp, fj], axis=-1)                 # (B,N,K,3+C)
    h = jnp.einsum('bnkc,oc->bnko', feat, w1)
    h = (h - m1) / jnp.sqrt(v1 + eps) * g1 + be1
    h = jnp.max(jnp.maximum(h, 0.0), axis=2)                  # (B,N,C)
    h2 = jnp.einsum('bnc,oc->bno', h, w2)
    h2 = jnp.maximum((h2 - m2) / jnp.sqrt(v2 + eps) * g2 + be2, 0.0)
    h3 = jnp.einsum('bnc,oc->bno', h2, w3)
    h3 = (h3 - m3) / jnp.sqrt(v3 + eps) * g3 + be3
    out = jnp.maximum(h3 + jnp.transpose(f, (0, 2, 1)), 0.0)
    return jnp.transpose(out, (0, 2, 1))                      # (B,C,N)


if __name__ == "__main__":
    key = jax.random.PRNGKey(0)
    B, N, C = 2, 16, 4                 # in_channels = 4
    nsample, radius = 8, 0.25
    expansion = 1
    C_mid = C * expansion
    C_in = 3 + C                       # CHANNEL_MAP['dp_fj']

    keys = jax.random.split(key, 18)
    p = jax.random.uniform(keys[0], (B, N, 3), dtype=jnp.float32)
    f = jax.random.normal(keys[1], (B, C, N), dtype=jnp.float32)

    # LocalAggregation conv2d 1x1 (3+C -> C) + BN stats
    w1 = 0.1 * jax.random.normal(keys[2], (C, C_in), dtype=jnp.float32)
    g1 = 1.0 + 0.1 * jax.random.normal(keys[3], (C,), dtype=jnp.float32)
    be1 = 0.1 * jax.random.normal(keys[4], (C,), dtype=jnp.float32)
    m1 = 0.1 * jax.random.normal(keys[5], (C,), dtype=jnp.float32)
    v1 = jax.random.uniform(keys[6], (C,), minval=0.5, maxval=1.5)
    # pwconv[0] conv1d (C -> C_mid) + BN stats
    w2 = 0.1 * jax.random.normal(keys[7], (C_mid, C), dtype=jnp.float32)
    g2 = 1.0 + 0.1 * jax.random.normal(keys[8], (C_mid,), dtype=jnp.float32)
    be2 = 0.1 * jax.random.normal(keys[9], (C_mid,), dtype=jnp.float32)
    m2 = 0.1 * jax.random.normal(keys[10], (C_mid,), dtype=jnp.float32)
    v2 = jax.random.uniform(keys[11], (C_mid,), minval=0.5, maxval=1.5)
    # pwconv[1] conv1d (C_mid -> C) + BN stats (no activation in this block)
    w3 = 0.1 * jax.random.normal(keys[12], (C, C_mid), dtype=jnp.float32)
    g3 = 1.0 + 0.1 * jax.random.normal(keys[13], (C,), dtype=jnp.float32)
    be3 = 0.1 * jax.random.normal(keys[14], (C,), dtype=jnp.float32)
    m3 = 0.1 * jax.random.normal(keys[15], (C,), dtype=jnp.float32)
    v3 = jax.random.uniform(keys[16], (C,), minval=0.5, maxval=1.5)

    # Fold eval-mode BN into the conv weights; only biases remain as operands.
    w1f, b1 = fold_conv_bn(w1, g1, be1, m1, v1)
    w2f, b2 = fold_conv_bn(w2, g2, be2, m2, v2)
    w3f, b3 = fold_conv_bn(w3, g3, be3, m3, v3)

    # Block-diagonal LocalAggregation weight over the padded channel slab.
    c_in_pad = _padded_c_in(C_in, nsample)
    wbd = build_block_diag_weight(w1f, nsample, c_in_pad)

    params = dict(
        wbd=wbd.astype(jnp.bfloat16), b1=b1,     # bf16 only on MXU operands
        w2=w2f.astype(jnp.bfloat16), b2=b2,
        w3=w3f.astype(jnp.bfloat16), b3=b3,
    )

    p_out, f_out = invres_mlp_forward(p, f, params, radius=radius, nsample=nsample)
    f_out = jax.block_until_ready(f_out)
    assert f_out.shape == (B, C, N), f_out.shape
    assert bool(jnp.all(jnp.isfinite(f_out)))

    f_ref = invres_mlp_reference(p, f, w1, g1, be1, m1, v1, w2, g2, be2, m2, v2,
                                 w3, g3, be3, m3, v3, radius=radius, nsample=nsample)
    max_err = float(jnp.max(jnp.abs(f_out - f_ref)))
    assert max_err < 3e-2, f"max abs error {max_err}"
    print("KERNEL_OK")
</pallas_src>

<mosaic_0001>
module attributes {stable_mosaic.version = 11 : i64} {
  func.func @_invres_mlp_kernel(%arg0: i32, %arg1: memref<64x128xbf16, #tpu.memory_space<vmem>>, %arg2: memref<4x128xf32, #tpu.memory_space<vmem>>, %arg3: memref<32x64xbf16, #tpu.memory_space<vmem>>, %arg4: memref<4x1xf32, #tpu.memory_space<vmem>>, %arg5: memref<4x4xbf16, #tpu.memory_space<vmem>>, %arg6: memref<4x1xf32, #tpu.memory_space<vmem>>, %arg7: memref<4x4xbf16, #tpu.memory_space<vmem>>, %arg8: memref<4x1xf32, #tpu.memory_space<vmem>>, %arg9: memref<4x128xf32, #tpu.memory_space<vmem>>) attributes {dimension_semantics = [#tpu.dimension_semantics<parallel>], iteration_bounds = array<i64: 1>, scalar_prefetch = 0 : i64, scratch_operands = 0 : i64, tpu.core_type = #tpu.core_type<tc>, window_params = [{transform_indices = @transform_0, window_bounds = array<i64: 64, 128>}, {transform_indices = @transform_1, window_bounds = array<i64: 4, 128>}, {pipeline_mode = #tpu.pipeline_mode<synchronous>, transform_indices = @transform_2, window_bounds = array<i64: 32, 64>}, {pipeline_mode = #tpu.pipeline_mode<synchronous>, transform_indices = @transform_3, window_bounds = array<i64: 4, 1>}, {pipeline_mode = #tpu.pipeline_mode<synchronous>, transform_indices = @transform_4, window_bounds = array<i64: 4, 4>}, {pipeline_mode = #tpu.pipeline_mode<synchronous>, transform_indices = @transform_5, window_bounds = array<i64: 4, 1>}, {pipeline_mode = #tpu.pipeline_mode<synchronous>, transform_indices = @transform_6, window_bounds = array<i64: 4, 4>}, {pipeline_mode = #tpu.pipeline_mode<synchronous>, transform_indices = @transform_7, window_bounds = array<i64: 4, 1>}, {transform_indices = @transform_8, window_bounds = array<i64: 4, 128>}]} {
    %c0 = arith.constant 0 : index
    %c0_0 = arith.constant 0 : index
    %0 = vector.load %arg3[%c0, %c0_0] : memref<32x64xbf16, #tpu.memory_space<vmem>>, vector<32x64xbf16>
    %c0_1 = arith.constant 0 : index
    %c0_2 = arith.constant 0 : index
    %1 = vector.load %arg1[%c0_1, %c0_2] : memref<64x128xbf16, #tpu.memory_space<vmem>>, vector<64x128xbf16>
    %cst = arith.constant dense<0.000000e+00> : vector<32x128xf32>
    %2 = tpu.matmul %0, %1, %cst {dimension_numbers = #tpu.dot_dimension_numbers<[1], [0], [0], [1], [0, 0, 1, 1], [], []>} : vector<32x64xbf16>, vector<64x128xbf16>, vector<32x128xf32> -> vector<32x128xf32>
    %3 = vector.extract_strided_slice %2 {offsets = [0, 0], sizes = [16, 128], strides = [1, 1]} : vector<32x128xf32> to vector<16x128xf32>
    %4 = vector.extract_strided_slice %2 {offsets = [16, 0], sizes = [16, 128], strides = [1, 1]} : vector<32x128xf32> to vector<16x128xf32>
    %5 = arith.maximumf %3, %4 : vector<16x128xf32>
    %6 = vector.extract_strided_slice %5 {offsets = [0, 0], sizes = [8, 128], strides = [1, 1]} : vector<16x128xf32> to vector<8x128xf32>
    %7 = vector.extract_strided_slice %5 {offsets = [8, 0], sizes = [8, 128], strides = [1, 1]} : vector<16x128xf32> to vector<8x128xf32>
    %8 = arith.maximumf %6, %7 : vector<8x128xf32>
    %9 = vector.extract_strided_slice %8 {offsets = [0, 0], sizes = [4, 128], strides = [1, 1]} : vector<8x128xf32> to vector<4x128xf32>
    %10 = vector.extract_strided_slice %8 {offsets = [4, 0], sizes = [4, 128], strides = [1, 1]} : vector<8x128xf32> to vector<4x128xf32>
    %11 = arith.maximumf %9, %10 : vector<4x128xf32>
    %c0_3 = arith.constant 0 : index
    %c0_4 = arith.constant 0 : index
    %12 = vector.load %arg4[%c0_3, %c0_4] : memref<4x1xf32, #tpu.memory_space<vmem>>, vector<4x1xf32>
    %13 = vector.broadcast %12 : vector<4x1xf32> to vector<4x128xf32>
    %14 = arith.addf %11, %13 : vector<4x128xf32>
    %cst_5 = arith.constant 0.000000e+00 : f32
    %15 = vector.broadcast %cst_5 : f32 to vector<4x128xf32>
    %16 = arith.maximumf %14, %15 : vector<4x128xf32>
    %c0_6 = arith.constant 0 : index
    %c0_7 = arith.constant 0 : index
    %17 = vector.load %arg5[%c0_6, %c0_7] : memref<4x4xbf16, #tpu.memory_space<vmem>>, vector<4x4xbf16>
    %18 = arith.truncf %16 : vector<4x128xf32> to vector<4x128xbf16>
    %cst_8 = arith.constant dense<0.000000e+00> : vector<4x128xf32>
    %19 = tpu.matmul %17, %18, %cst_8 {dimension_numbers = #tpu.dot_dimension_numbers<[1], [0], [0], [1], [0, 0, 1, 1], [], []>} : vector<4x4xbf16>, vector<4x128xbf16>, vector<4x128xf32> -> vector<4x128xf32>
    %c0_9 = arith.constant 0 : index
    %c0_10 = arith.constant 0 : index
    %20 = vector.load %arg6[%c0_9, %c0_10] : memref<4x1xf32, #tpu.memory_space<vmem>>, vector<4x1xf32>
    %21 = vector.broadcast %20 : vector<4x1xf32> to vector<4x128xf32>
    %22 = arith.addf %19, %21 : vector<4x128xf32>
    %cst_11 = arith.constant 0.000000e+00 : f32
    %23 = vector.broadcast %cst_11 : f32 to vector<4x128xf32>
    %24 = arith.maximumf %22, %23 : vector<4x128xf32>
    %c0_12 = arith.constant 0 : index
    %c0_13 = arith.constant 0 : index
    %25 = vector.load %arg7[%c0_12, %c0_13] : memref<4x4xbf16, #tpu.memory_space<vmem>>, vector<4x4xbf16>
    %26 = arith.truncf %24 : vector<4x128xf32> to vector<4x128xbf16>
    %cst_14 = arith.constant dense<0.000000e+00> : vector<4x128xf32>
    %27 = tpu.matmul %25, %26, %cst_14 {dimension_numbers = #tpu.dot_dimension_numbers<[1], [0], [0], [1], [0, 0, 1, 1], [], []>} : vector<4x4xbf16>, vector<4x128xbf16>, vector<4x128xf32> -> vector<4x128xf32>
    %c0_15 = arith.constant 0 : index
    %c0_16 = arith.constant 0 : index
    %28 = vector.load %arg8[%c0_15, %c0_16] : memref<4x1xf32, #tpu.memory_space<vmem>>, vector<4x1xf32>
    %29 = vector.broadcast %28 : vector<4x1xf32> to vector<4x128xf32>
    %30 = arith.addf %27, %29 : vector<4x128xf32>
    %c0_17 = arith.constant 0 : index
    %c0_18 = arith.constant 0 : index
    %31 = vector.load %arg2[%c0_17, %c0_18] : memref<4x128xf32, #tpu.memory_space<vmem>>, vector<4x128xf32>
    %32 = arith.addf %30, %31 : vector<4x128xf32>
    %cst_19 = arith.constant 0.000000e+00 : f32
    %33 = vector.broadcast %cst_19 : f32 to vector<4x128xf32>
    %34 = arith.maximumf %32, %33 : vector<4x128xf32>
    %c0_20 = arith.constant 0 : index
    %c0_21 = arith.constant 0 : index
    %35 = vector.load %arg9[%c0_20, %c0_21] : memref<4x128xf32, #tpu.memory_space<vmem>>, vector<4x128xf32>
    tpu.vector_store %arg9[%c0_20, %c0_21], %34 {strides = array<i32>} : memref<4x128xf32, #tpu.memory_space<vmem>>, vector<4x128xf32>,
    return
  }
  func.func @transform_0(%arg0: i32) -> (i32, i32) {
    %c0_i32 = arith.constant 0 : i32
    %c0_i32_0 = arith.constant 0 : i32
    return %c0_i32, %arg0 : i32, i32
  }
  func.func @transform_1(%arg0: i32) -> (i32, i32) {
    %c0_i32 = arith.constant 0 : i32
    %c0_i32_0 = arith.constant 0 : i32
    return %c0_i32, %arg0 : i32, i32
  }
  func.func @transform_2(%arg0: i32) -> (i32, i32) {
    %c0_i32 = arith.constant 0 : i32
    %c0_i32_0 = arith.constant 0 : i32
    %c0_i32_1 = arith.constant 0 : i32
    return %c0_i32, %c0_i32_0 : i32, i32
  }
  func.func @transform_3(%arg0: i32) -> (i32, i32) {
    %c0_i32 = arith.constant 0 : i32
    %c0_i32_0 = arith.constant 0 : i32
    %c0_i32_1 = arith.constant 0 : i32
    return %c0_i32, %c0_i32_0 : i32, i32
  }
  func.func @transform_4(%arg0: i32) -> (i32, i32) {
    %c0_i32 = arith.constant 0 : i32
    %c0_i32_0 = arith.constant 0 : i32
    %c0_i32_1 = arith.constant 0 : i32
    return %c0_i32, %c0_i32_0 : i32, i32
  }
  func.func @transform_5(%arg0: i32) -> (i32, i32) {
    %c0_i32 = arith.constant 0 : i32
    %c0_i32_0 = arith.constant 0 : i32
    %c0_i32_1 = arith.constant 0 : i32
    return %c0_i32, %c0_i32_0 : i32, i32
  }
  func.func @transform_6(%arg0: i32) -> (i32, i32) {
    %c0_i32 = arith.constant 0 : i32
    %c0_i32_0 = arith.constant 0 : i32
    %c0_i32_1 = arith.constant 0 : i32
    return %c0_i32, %c0_i32_0 : i32, i32
  }
  func.func @transform_7(%arg0: i32) -> (i32, i32) {
    %c0_i32 = arith.constant 0 : i32
    %c0_i32_0 = arith.constant 0 : i32
    %c0_i32_1 = arith.constant 0 : i32
    return %c0_i32, %c0_i32_0 : i32, i32
  }
  func.func @transform_8(%arg0: i32) -> (i32, i32) {
    %c0_i32 = arith.constant 0 : i32
    %c0_i32_0 = arith.constant 0 : i32
    return %c0_i32, %arg0 : i32, i32
  }
}

</mosaic_0001>

<llo_original>
// kernel: tpu_custom_call.1
$region0: #{tpu_custom_call.1}
  #allocation0 [shape = 'u32[]', space=smem, size = 0x4, offset = 0x4, fixed_abs, tag = 'smem constant byte address 0x4 - core index']
  #allocation1 [shape = 'u32[144,128]{1,0:T(1,128)}', space=vmem, size = 0x12000, scoped, tag = 'internal scratch']
  %s0 = inlined_call_operand.hbm [shape: bf16[64,128], index: 0, kind: input, shape index: {}]
  %s1 = inlined_call_operand.hbm [shape: f32[4,128], index: 1, kind: input, shape index: {}]
  %s2 = inlined_call_operand.vmem [shape: bf16[32,64], index: 2, kind: input, shape index: {}]
  %s3 = inlined_call_operand.vmem [shape: f32[4,1], index: 3, kind: input, shape index: {}]
  %s4 = inlined_call_operand.vmem [shape: bf16[4,4], index: 4, kind: input, shape index: {}]
  %s5 = inlined_call_operand.vmem [shape: f32[4,1], index: 5, kind: input, shape index: {}]
  %s6 = inlined_call_operand.vmem [shape: bf16[4,4], index: 6, kind: input, shape index: {}]
  %s7 = inlined_call_operand.vmem [shape: f32[4,1], index: 7, kind: input, shape index: {}]
  %s8 = inlined_call_operand.hbm [shape: f32[4,128], index: 8, kind: output, shape index: {}]
  %s9 = sld [smem:[#allocation0]]
  $region50: #{tpu_custom_call.1} parent=0
    _
  %s11 = ssub.s32 1, %s9
  %s12 = scalar_select 0, %s11, %s9
  $region1: #{tpu_custom_call.1} parent=0
    #allocation2 [shape = 'u8[16384]{0}', space=vmem, size = 0x4000, scoped, tag = 'input window, operand 0, single buffered']
    #allocation3 [shape = 's32[1]{0}', space=sflag, size = 0x4, scoped, tag = 'scoped memory for tpu_custom_call.1']
    #allocation4 [shape = 's32[1]{0}', space=sflag, size = 0x4, scoped, tag = 'scoped memory for tpu_custom_call.1']
    #allocation5 [shape = 'u8[2048]{0}', space=vmem, size = 0x800, scoped, tag = 'input window, operand 1, single buffered']
    #allocation6 [shape = 's32[1]{0}', space=sflag, size = 0x4, scoped, tag = 'scoped memory for tpu_custom_call.1']
    #allocation7 [shape = 'u8[2048]{0}', space=vmem, size = 0x800, scoped, tag = 'output window, operand 0, single buffered']
    %13 = vsyncpa [#allocation3], 0
    %14 = vsyncpa [#allocation6], 0
    %15 = vsyncpa [#allocation4], 0
    // Predicated region
    $region2: #{tpu_custom_call.1} parent=1 // pred_check
      _
    $region3: #{tpu_custom_call.1} parent=1 // pred_check_branch
      %17 = sbr.rel (0) target = $region5
    $region4: #{tpu_custom_call.1} parent=1 // pred_region
      %s19 = ssub.s32 512, 512
      %20 = vsyncadd [#allocation3], %s19
      %s21 = sshll.u32 [#allocation2], 4
      %s22 = int_to_ptr.vmem [resolvable:$true] %s21
      %27 = dma.hbm_to_vmem [thread:$0]  %s0, 512, %s22, [#allocation3], 64, 64, 4
    $region5: #{tpu_custom_call.1} parent=1 // pred_fallthru
      _
    // Predicated region
    $region6: #{tpu_custom_call.1} parent=1 // pred_check
      _
    $region7: #{tpu_custom_call.1} parent=1 // pred_check_branch
      %29 = sbr.rel (0) target = $region9
    $region8: #{tpu_custom_call.1} parent=1 // pred_region
      %s31 = ssub.s32 64, 64
      %32 = vsyncadd [#allocation6], %s31
      %s34 = sshll.u32 [#allocation5], 4
      %s35 = int_to_ptr.vmem [resolvable:$true] %s34
      %37 = dma.hbm_to_vmem [thread:$0]  %s1, 64, %s35, [#allocation6]
    $region9: #{tpu_custom_call.1} parent=1 // pred_fallthru
      _
    // Predicated region
    $region10: #{tpu_custom_call.1} parent=1 // pred_check
      _
    $region11: #{tpu_custom_call.1} parent=1 // pred_check_branch
      %39 = sbr.rel (0) target = $region13
    $region12: #{tpu_custom_call.1} parent=1 // pred_region
      _
    $region13: #{tpu_custom_call.1} parent=1 // pred_fallthru
      _
    // Predicated region
    $region14: #{tpu_custom_call.1} parent=1 // pred_check
      _
    $region15: #{tpu_custom_call.1} parent=1 // pred_check_branch
      %41 = sbr.rel (0) target = $region17
    $region16: #{tpu_custom_call.1} parent=1 // pred_region
      _
    $region17: #{tpu_custom_call.1} parent=1 // pred_fallthru
      _
    // Predicated region
    $region18: #{tpu_custom_call.1} parent=1 // pred_check
      _
    $region19: #{tpu_custom_call.1} parent=1 // pred_check_branch
      %43 = sbr.rel (0) target = $region21
    $region20: #{tpu_custom_call.1} parent=1 // pred_region
      _
    $region21: #{tpu_custom_call.1} parent=1 // pred_fallthru
      _
    // Predicated region
    $region22: #{tpu_custom_call.1} parent=1 // pred_check
      _
    $region23: #{tpu_custom_call.1} parent=1 // pred_check_branch
      %45 = sbr.rel (0) target = $region25
    $region24: #{tpu_custom_call.1} parent=1 // pred_region
      _
    $region25: #{tpu_custom_call.1} parent=1 // pred_fallthru
      _
    // Predicated region
    $region26: #{tpu_custom_call.1} parent=1 // pred_check
      _
    $region27: #{tpu_custom_call.1} parent=1 // pred_check_branch
      %47 = sbr.rel (0) target = $region29
    $region28: #{tpu_custom_call.1} parent=1 // pred_region
      _
    $region29: #{tpu_custom_call.1} parent=1 // pred_fallthru
      _
    // Predicated region
    $region30: #{tpu_custom_call.1} parent=1 // pred_check
      _
    $region31: #{tpu_custom_call.1} parent=1 // pred_check_branch
      %49 = sbr.rel (0) target = $region33
    $region32: #{tpu_custom_call.1} parent=1 // pred_region
      _
    $region33: #{tpu_custom_call.1} parent=1 // pred_fallthru
      _
    // Predicated region
    $region34: #{tpu_custom_call.1} parent=1 // pred_check
      _
    $region35: #{tpu_custom_call.1} parent=1 // pred_check_branch
      %51 = sbr.rel (0) target = $region37
    $region36: #{tpu_custom_call.1} parent=1 // pred_region
      %52 = dma.done [#allocation3], 512
    $region37: #{tpu_custom_call.1} parent=1 // pred_fallthru
      _
    // Predicated region
    $region38: #{tpu_custom_call.1} parent=1 // pred_check
      _
    $region39: #{tpu_custom_call.1} parent=1 // pred_check_branch
      %54 = sbr.rel (0) target = $region41
    $region40: #{tpu_custom_call.1} parent=1 // pred_region
      %55 = dma.done [#allocation6], 64
    $region41: #{tpu_custom_call.1} parent=1 // pred_fallthru
      _
    %v57 = vld [vmem:[%s2] sm:$0xf]
    %v58 = vld [vmem:[%s2 + $0x4] sm:$0xf]
    %v59 = vld [vmem:[%s2 + $0x8] sm:$0xf]
    %v60 = vld [vmem:[%s2 + $0xc] sm:$0xf]
    %v61 = vld [vmem:[#allocation2] sm:$0xf]
    %v62 = vld [vmem:[#allocation2 + $0x4] sm:$0xf]
    %v63 = vld [vmem:[#allocation2 + $0x8] sm:$0xf]
    %v64 = vld [vmem:[#allocation2 + $0xc] sm:$0xf]
    %v65 = vld [vmem:[#allocation2 + $0x10] sm:$0xf]
    %v66 = vld [vmem:[#allocation2 + $0x14] sm:$0xf]
    %v67 = vld [vmem:[#allocation2 + $0x18] sm:$0xf]
    %v68 = vld [vmem:[#allocation2 + $0x1c] sm:$0xf]
    %v73 = vunpack.c.l.b16 %v57
    %v74 = vunpack.c.l.b16 %v58
    %v75 = vunpack.c.l.b16 %v59
    %v76 = vunpack.c.l.b16 %v60
    %v77 = vpack.c.b16 %v74, %v73
    %v78 = vpack.c.b16 %v76, %v75
    %v87 = vunpack.c.l.b16 %v61
    %v88 = vunpack.c.l.b16 %v62
    %v89 = vunpack.c.l.b16 %v63
    %v90 = vunpack.c.l.b16 %v64
    %v91 = vunpack.c.l.b16 %v65
    %v92 = vunpack.c.l.b16 %v66
    %v93 = vunpack.c.l.b16 %v67
    %v94 = vunpack.c.l.b16 %v68
    %v95 = vpack.c.b16 %v88, %v87
    %v96 = vpack.c.b16 %v90, %v89
    %v97 = vpack.c.b16 %v92, %v91
    %v98 = vpack.c.b16 %v94, %v93
    %vm103 = vcmask 523264
    %v105 = vsel %vm103, %v77, 0
    %v108 = vsel %vm103, %v78, 0
    %110 = vmatprep.subr.bf16.mxu0 0
    %111 = vmatpush1.bf16.msra.mxu0 0
    %112 = vmatprep.subr.bf16.mxu0 0
    %113 = vmatpush1.bf16.msra.mxu0 0
    %114 = vmatprep.subr.bf16.mxu0 0
    %115 = vmatpush1.bf16.msra.mxu0 0
    %116 = vmatprep.subr.bf16.mxu0 0
    %117 = vmatpush1.bf16.msra.mxu0 0
    %118 = vmatprep.subr.bf16.mxu0 0
    %119 = vmatpush1.bf16.msra.mxu0 %v98
    %120 = vmatprep.subr.bf16.mxu0 0
    %121 = vmatpush1.bf16.msra.mxu0 %v97
    %122 = vmatprep.subr.bf16.mxu0 0
    %123 = vmatpush1.bf16.msra.mxu0 %v96
    %124 = vmatprep.subr.bf16.mxu0 0
    %125 = vmatpush1.bf16.msra.mxu0 %v95
    %126 = vmatprep.subr.bf16.mxu0 0
    %127 = vmatpush2.bf16.msra.mxu0 0
    %128 = vmatprep.subr.bf16.mxu0 0
    %129 = vmatpush2.bf16.msra.mxu0 0
    %130 = vmatprep.subr.bf16.mxu0 0
    %131 = vmatpush2.bf16.msra.mxu0 0
    %132 = vmatprep.subr.bf16.mxu0 0
    %133 = vmatpush2.bf16.msra.mxu0 0
    %134 = vmatprep.subr.bf16.mxu0 0
    %135 = vmatpush2.bf16.msra.mxu0 0
    %136 = vmatprep.subr.bf16.mxu0 0
    %137 = vmatpush2.bf16.msra.mxu0 0
    %138 = vmatprep.subr.bf16.mxu0 0
    %139 = vmatpush2.bf16.msra.mxu0 0
    %140 = vmatprep.subr.bf16.mxu0 0
    %141 = vmatpush2.bf16.msra.mxu0 0
    %142 = vmatprep.mubr.bf16.mxu0 0
    %143 = vmatmul.mubr.bf16.gmra.mxu0 %v105
    %v144 = vpop.f32.mrf.mxu0
    %v145 = vadd.f32 0.0, %v144
    %v146 = vpop.f32.mrf.mxu0
    %v147 = vpop.f32.mrf.mxu0
    %v148 = vadd.f32 0.0, %v147
    %v149 = vpop.f32.mrf.mxu0
    %150 = vmatprep.mubr.bf16.mxu0 0
    %151 = vmatmul.mubr.bf16.gmra.mxu0 %v108
    %v152 = vpop.f32.mrf.mxu0
    %v153 = vadd.f32 0.0, %v152
    %v154 = vpop.f32.mrf.mxu0
    %v155 = vpop.f32.mrf.mxu0
    %v156 = vadd.f32 0.0, %v155
    %v157 = vpop.f32.mrf.mxu0
    %158 = vdwg.mxu0
    %v159 = vmax.f32 %v145, %v153
    %v160 = vmax.f32 %v148, %v156
    %v161 = vmax.f32 %v159, %v160
    %v163 = vrot.slane %v161, 4
    %v165 = vmax.f32 %v161, %v163
    %v166 = vld [vmem:[%s3] sm:$0xf]
    %168 = vset.pattern.permute.xlu0 0
    %169 = vperm.xlu0 %168, %v166
    %v170 = vpop.permute.xlu0 %169
    %v172 = vadd.f32 %v165, %v170
    %v173 = vmax.f32 %v172, 0.0
    %v174 = vld [vmem:[%s4] sm:$0x3]
    %v175 = vpack.c.bf16 %v173, %v173
    %v176 = vld [vmem:[%s5] sm:$0xf]
    %178 = vset.pattern.permute.xlu0 0
    %179 = vperm.xlu0 %178, %v176
    %v180 = vpop.permute.xlu0 %179
    %vm182 = vcmask 31744
    %v184 = vsel %vm182, %v174, 0
    %vm186 = vcmask 1041408
    %v188 = vsel %vm186, %v175, 0
    %190 = vmatprep.subr.bf16.mxu0 0
    %191 = vmatpush1.bf16.msra.mxu0 0
    %192 = vmatprep.subr.bf16.mxu0 0
    %193 = vmatpush1.bf16.msra.mxu0 0
    %194 = vmatprep.subr.bf16.mxu0 0
    %195 = vmatpush1.bf16.msra.mxu0 0
    %196 = vmatprep.subr.bf16.mxu0 0
    %197 = vmatpush1.bf16.msra.mxu0 0
    %198 = vmatprep.subr.bf16.mxu0 0
    %199 = vmatpush1.bf16.msra.mxu0 0
    %200 = vmatprep.subr.bf16.mxu0 0
    %201 = vmatpush1.bf16.msra.mxu0 0
    %202 = vmatprep.subr.bf16.mxu0 0
    %203 = vmatpush1.bf16.msra.mxu0 0
    %204 = vmatprep.subr.bf16.mxu0 0
    %205 = vmatpush1.bf16.msra.mxu0 %v188
    %206 = vmatprep.subr.bf16.mxu0 0
    %207 = vmatpush2.bf16.msra.mxu0 0
    %208 = vmatprep.subr.bf16.mxu0 0
    %209 = vmatpush2.bf16.msra.mxu0 0
    %210 = vmatprep.subr.bf16.mxu0 0
    %211 = vmatpush2.bf16.msra.mxu0 0
    %212 = vmatprep.subr.bf16.mxu0 0
    %213 = vmatpush2.bf16.msra.mxu0 0
    %214 = vmatprep.subr.bf16.mxu0 0
    %215 = vmatpush2.bf16.msra.mxu0 0
    %216 = vmatprep.subr.bf16.mxu0 0
    %217 = vmatpush2.bf16.msra.mxu0 0
    %218 = vmatprep.subr.bf16.mxu0 0
    %219 = vmatpush2.bf16.msra.mxu0 0
    %220 = vmatprep.subr.bf16.mxu0 0
    %221 = vmatpush2.bf16.msra.mxu0 0
    %222 = vmatprep.mubr.bf16.mxu0 0
    %223 = vmatmul.mubr.bf16.gmra.mxu0 %v184
    %v224 = vpop.f32.mrf.mxu0
    %v225 = vadd.f32 %v180, %v224
    %v226 = vpop.f32.mrf.mxu0
    %v227 = vpop.f32.mrf.mxu0
    %v228 = vpop.f32.mrf.mxu0
    %229 = vdwg.mxu0
    %v230 = vmax.f32 %v225, 0.0
    %v231 = vld [vmem:[%s6] sm:$0x3]
    %v232 = vpack.c.bf16 %v230, %v230
    %v233 = vld [vmem:[%s7] sm:$0xf]
    %235 = vset.pattern.permute.xlu0 0
    %236 = vperm.xlu0 %235, %v233
    %v237 = vpop.permute.xlu0 %236
    %v240 = vsel %vm182, %v231, 0
    %v243 = vsel %vm186, %v232, 0
    %245 = vmatprep.subr.bf16.mxu0 0
    %246 = vmatpush1.bf16.msra.mxu0 0
    %247 = vmatprep.subr.bf16.mxu0 0
    %248 = vmatpush1.bf16.msra.mxu0 0
    %249 = vmatprep.subr.bf16.mxu0 0
    %250 = vmatpush1.bf16.msra.mxu0 0
    %251 = vmatprep.subr.bf16.mxu0 0
    %252 = vmatpush1.bf16.msra.mxu0 0
    %253 = vmatprep.subr.bf16.mxu0 0
    %254 = vmatpush1.bf16.msra.mxu0 0
    %255 = vmatprep.subr.bf16.mxu0 0
    %256 = vmatpush1.bf16.msra.mxu0 0
    %257 = vmatprep.subr.bf16.mxu0 0
    %258 = vmatpush1.bf16.msra.mxu0 0
    %259 = vmatprep.subr.bf16.mxu0 0
    %260 = vmatpush1.bf16.msra.mxu0 %v243
    %261 = vmatprep.subr.bf16.mxu0 0
    %262 = vmatpush2.bf16.msra.mxu0 0
    %263 = vmatprep.subr.bf16.mxu0 0
    %264 = vmatpush2.bf16.msra.mxu0 0
    %265 = vmatprep.subr.bf16.mxu0 0
    %266 = vmatpush2.bf16.msra.mxu0 0
    %267 = vmatprep.subr.bf16.mxu0 0
    %268 = vmatpush2.bf16.msra.mxu0 0
    %269 = vmatprep.subr.bf16.mxu0 0
    %270 = vmatpush2.bf16.msra.mxu0 0
    %271 = vmatprep.subr.bf16.mxu0 0
    %272 = vmatpush2.bf16.msra.mxu0 0
    %273 = vmatprep.subr.bf16.mxu0 0
    %274 = vmatpush2.bf16.msra.mxu0 0
    %275 = vmatprep.subr.bf16.mxu0 0
    %276 = vmatpush2.bf16.msra.mxu0 0
    %277 = vmatprep.mubr.bf16.mxu0 0
    %278 = vmatmul.mubr.bf16.gmra.mxu0 %v240
    %v279 = vpop.f32.mrf.mxu0
    %v280 = vadd.f32 %v237, %v279
    %v281 = vpop.f32.mrf.mxu0
    %v282 = vpop.f32.mrf.mxu0
    %v283 = vpop.f32.mrf.mxu0
    %284 = vdwg.mxu0
    %v285 = vld [vmem:[#allocation5] sm:$0xf]
    %v286 = vadd.f32 %v280, %v285
    %v287 = vmax.f32 %v286, 0.0
    %288 = vst [vmem:[#allocation7] sm:$0xf] %v287
    // Predicated region
    $region42: #{tpu_custom_call.1} parent=1 // pred_check
      _
    $region43: #{tpu_custom_call.1} parent=1 // pred_check_branch
      %290 = sbr.rel (0) target = $region45
    $region44: #{tpu_custom_call.1} parent=1 // pred_region
      %s292 = ssub.s32 64, 64
      %293 = vsyncadd [#allocation4], %s292
      %s295 = sshll.u32 [#allocation7], 4
      %s296 = int_to_ptr.vmem [resolvable:$true] %s295
      %298 = dma.vmem_to_hbm [thread:$0]  %s296, 64, %s8, [#allocation4]
    $region45: #{tpu_custom_call.1} parent=1 // pred_fallthru
      _
    // Predicated region
    $region46: #{tpu_custom_call.1} parent=1 // pred_check
      _
    $region47: #{tpu_custom_call.1} parent=1 // pred_check_branch
      %300 = sbr.rel (0) target = $region49
    $region48: #{tpu_custom_call.1} parent=1 // pred_region
      %301 = dma.done [#allocation4], 64
    $region49: #{tpu_custom_call.1} parent=1 // pred_fallthru
      _
    %302 = vsyncpa [#allocation3], 1
    %303 = vsyncpa [#allocation6], 1
    %304 = vsyncpa [#allocation4], 1

</llo_original>
